<compile_context>
chip_gen: v7x
topology: tpu7x:2x2x1
jax: 0.10.0
libtpu: 0.0.40
codegen_flags: <defaults>
</compile_context>

<pallas_src>
import functools

import jax
import jax.numpy as jnp
from jax.experimental import pallas as pl
from jax.experimental.pallas import tpu as pltpu

# CLIP preprocessing normalization constants (the Normalize transform kept by
# `clip_preprocess.transforms[4:]`).
_CLIP_MEAN = jnp.array([0.48145466, 0.4578275, 0.40821073], jnp.float32)
_CLIP_STD = jnp.array([0.26862954, 0.26130258, 0.27577711], jnp.float32)

_LANE = 128


def _round_up(n, m):
    return (n + m - 1) // m * m


# ----------------------------------------------------------------------------
# Fused Pallas kernel
# ----------------------------------------------------------------------------
def _clip_fused_kernel(xp_ref, w_ref, tm_ref, o_ref):
    """Fused synthetic-CLIP energy.

    xp_ref : [B, Kp]   bf16  patch-mean-pooled, preprocessed pixels
    w_ref  : [Kp, D]   bf16  fused (patch-embed @ image-projection) weights
    tm_ref : [1, D]    f32   mean over prompts of L2-normalized text features
    o_ref  : [B, 128]  f32   loss broadcast across lanes (lane-dense store)
    """
    # Single MXU matmul: bf16 operands, f32 accumulate.
    img = jnp.dot(xp_ref[...], w_ref[...], preferred_element_type=jnp.float32)  # [B, D]

    # L2 normalization in f32 (VPU mult/sum + EUP rsqrt), eps for robustness.
    sq = jnp.sum(img * img, axis=-1, keepdims=True)
    img_n = img * jax.lax.rsqrt(jnp.maximum(sq, 1e-12))

    # Similarity on the VPU: elementwise mult + lane reduce.  The mean over the
    # T text prompts is already folded into tm_ref (dot product is linear in
    # the text operand), so loss[b] = 1 - img_n[b] . txt_mean.
    sim = jnp.sum(img_n * tm_ref[...], axis=-1, keepdims=True)            # [B, 1]

    # Lane-dense store: broadcast the per-row loss across all 128 lanes.
    o_ref[...] = jnp.broadcast_to(1.0 - sim, o_ref.shape)


def pallas_clip_energy(x_pooled, w_fused, txt_mean):
    B, Kp = x_pooled.shape
    Kp2, D = w_fused.shape
    assert Kp == Kp2 and txt_mean.shape == (1, D)
    assert Kp % _LANE == 0 and D % _LANE == 0

    # bf16 for MXU operands only; the text vector is consumed by VPU math.
    x_bf16 = x_pooled.astype(jnp.bfloat16)
    w_bf16 = w_fused.astype(jnp.bfloat16)

    out_lanes = _LANE
    # vmem limit from actual (double-buffered) buffer bytes, with headroom.
    buf_bytes = 2 * (
        x_bf16.size * x_bf16.dtype.itemsize
        + w_bf16.size * w_bf16.dtype.itemsize
        + txt_mean.size * txt_mean.dtype.itemsize
        + B * out_lanes * 4
    )
    vmem_limit = max(4 * int(buf_bytes), 4 * 1024 * 1024)

    out = pl.pallas_call(
        _clip_fused_kernel,
        out_shape=jax.ShapeDtypeStruct((B, out_lanes), jnp.float32),
        in_specs=[
            pl.BlockSpec((B, Kp), lambda: (0, 0)),
            pl.BlockSpec((Kp, D), lambda: (0, 0)),
            pl.BlockSpec((1, D), lambda: (0, 0)),
        ],
        out_specs=pl.BlockSpec((B, out_lanes), lambda: (0, 0)),
        compiler_params=pltpu.CompilerParams(vmem_limit_bytes=vmem_limit),
    )(x_bf16, w_bf16, txt_mean)
    return out[:, 0]                                           # [B]


# ----------------------------------------------------------------------------
# Synthetic "CLIP" params + glue (preprocess / patch pooling / text tower)
# ----------------------------------------------------------------------------
def make_params(key, *, channels, patch, embed_dim, vocab):
    assert embed_dim % _LANE == 0, "embed_dim should be a multiple of 128"
    k1, k2, k3, k4 = jax.random.split(key, 4)
    hp = jax.lax.Precision.HIGHEST
    patch_dim = channels * patch * patch
    patch_dim_p = _round_up(patch_dim, _LANE)
    w_patch = jax.random.normal(k1, (patch_dim, embed_dim), jnp.float32) / jnp.sqrt(
        jnp.float32(patch_dim)
    )
    # Zero-pad the contraction rows so the patch matmul is lane-aligned (exact).
    w_patch = jnp.pad(w_patch, ((0, patch_dim_p - patch_dim), (0, 0)))
    w_img_proj = jax.random.normal(k2, (embed_dim, embed_dim), jnp.float32) / jnp.sqrt(
        jnp.float32(embed_dim)
    )
    return {
        "w_patch": w_patch,                                    # [Kp, D] (for ref)
        "w_img_proj": w_img_proj,                              # [D, D]  (for ref)
        # Offline fold of the image projection into the patch weights
        # (pure linear-algebra refactor, exact in f32 HIGHEST).
        "w_fused": jnp.dot(w_patch, w_img_proj, precision=hp), # [Kp, D]
        "tok_embed": jax.random.normal(k3, (vocab, embed_dim), jnp.float32) * 0.02,
        "w_txt_proj": jax.random.normal(k4, (embed_dim, embed_dim), jnp.float32)
        / jnp.sqrt(jnp.float32(embed_dim)),
    }


def _preprocess_pool_patches(img, patch):
    """[B, C, H, W] NCHW -> [B, round_up(C*p*p, 128)] mean-over-patches pixels.

    Pooling is applied BEFORE the patch matmul (linearity), shrinking both the
    kernel's DMA and its matmul M from B*P to B.
    """
    B, C, H, W = img.shape
    # TODO(synk): Resize / CenterCrop of the CLIP preprocess are skipped; the
    # input is assumed to already be at the target resolution.
    x = (img - _CLIP_MEAN[None, :, None, None]) / _CLIP_STD[None, :, None, None]
    ph, pw = H // patch, W // patch
    x = x.reshape(B, C, ph, patch, pw, patch)
    x = jnp.transpose(x, (0, 2, 4, 1, 3, 5)).reshape(B, ph * pw, C * patch * patch)
    x = jnp.mean(x, axis=1)                                    # [B, K]
    pad = _round_up(x.shape[1], _LANE) - x.shape[1]
    if pad:
        x = jnp.pad(x, ((0, 0), (0, pad)))
    return x


def _text_features_mean(params, tokens):
    """Static text tower, hoisted out of the per-image kernel (pure JAX).

    Returns mean_t(txt_n[t]) as [1, D]; since the similarity is linear in the
    text operand, mean_t(1 - img.txt_t) == 1 - img.mean_t(txt_t).
    """
    hp = jax.lax.Precision.HIGHEST
    # TODO(synk): real CLIP BPE tokenization + transformer text tower replaced
    # by a token-embedding gather + mean-pool + linear projection.
    txt_pooled = jnp.mean(params["tok_embed"][tokens], axis=1)            # [T, D]
    txt = jnp.dot(txt_pooled, params["w_txt_proj"], precision=hp)         # [T, D]
    txt_n = txt * jax.lax.rsqrt(
        jnp.maximum(jnp.sum(txt * txt, axis=-1, keepdims=True), 1e-12)
    )
    return jnp.mean(txt_n, axis=0, keepdims=True)                         # [1, D]


def clip_energy_forward(params, target_img, tokens, *, patch):
    x_pooled = _preprocess_pool_patches(target_img, patch)     # glue (image)
    txt_mean = _text_features_mean(params, tokens)             # glue (static text)
    return pallas_clip_energy(x_pooled, params["w_fused"], txt_mean)      # [B]


# ----------------------------------------------------------------------------
if __name__ == "__main__":
    B, C, H, W = 2, 3, 32, 32
    PATCH = 16          # C * PATCH * PATCH = 768 = 6 * 128  (lane-aligned K)
    EMBED = 128         # lane-aligned feature dim
    VOCAB = 32
    T, L = 1, 8         # one class string, tokenized to L tokens

    key = jax.random.PRNGKey(0)
    k_params, k_img, k_tok = jax.random.split(key, 3)

    params = make_params(k_params, channels=C, patch=PATCH, embed_dim=EMBED, vocab=VOCAB)
    target_img = jax.random.uniform(k_img, (B, C, H, W), jnp.float32)   # NCHW
    tokens = jax.random.randint(k_tok, (T, L), 0, VOCAB, jnp.int32)     # "tokenized class"

    fwd = jax.jit(functools.partial(clip_energy_forward, patch=PATCH))
    loss = jax.block_until_ready(fwd(params, target_img, tokens))

    # Pure-JAX f32 HIGHEST reference of the same synthetic-CLIP forward + energy
    # in the ORIGINAL op order (patch matmul -> pool -> projection).
    def ref_forward(params, img, tok, *, patch):
        hp = jax.lax.Precision.HIGHEST
        b, c, h, w = img.shape
        x = (img - _CLIP_MEAN[None, :, None, None]) / _CLIP_STD[None, :, None, None]
        ph, pw = h // patch, w // patch
        x = x.reshape(b, c, ph, patch, pw, patch)
        x = jnp.transpose(x, (0, 2, 4, 1, 3, 5)).reshape(b * ph * pw, c * patch * patch)
        pad = params["w_patch"].shape[0] - x.shape[1]
        if pad:
            x = jnp.pad(x, ((0, 0), (0, pad)))
        patch_emb = jnp.dot(x, params["w_patch"], precision=hp)
        pooled = jnp.mean(patch_emb.reshape(b, ph * pw, -1), axis=1)
        img_feat = jnp.dot(pooled, params["w_img_proj"], precision=hp)
        txt_feat = jnp.dot(jnp.mean(params["tok_embed"][tok], axis=1),
                           params["w_txt_proj"], precision=hp)
        i = img_feat / jnp.linalg.norm(img_feat, axis=-1, keepdims=True)
        t = txt_feat / jnp.linalg.norm(txt_feat, axis=-1, keepdims=True)
        return (1.0 - jnp.einsum("bz,tz->bt", i, t, precision=hp)).mean(1)

    expected = ref_forward(params, target_img, tokens, patch=PATCH)
    assert loss.shape == (B,)
    # Tolerance relaxed vs. f32: MXU operands are bf16 (the normalized-cosine
    # energy is well conditioned; observed error is O(1e-3)).
    assert jnp.allclose(loss, expected, atol=1e-2, rtol=1e-2), (loss, expected)

    print("KERNEL_OK")
</pallas_src>

<mosaic_0001>
module attributes {stable_mosaic.version = 11 : i64} {
  func.func @_clip_fused_kernel(%arg0: memref<2x768xbf16, #tpu.memory_space<vmem>>, %arg1: memref<768x128xbf16, #tpu.memory_space<vmem>>, %arg2: memref<1x128xf32, #tpu.memory_space<vmem>>, %arg3: memref<2x128xf32, #tpu.memory_space<vmem>>) attributes {dimension_semantics = [], scalar_prefetch = 0 : i64, scratch_operands = 0 : i64, tpu.core_type = #tpu.core_type<tc>} {
    %c0 = arith.constant 0 : index
    %c0_0 = arith.constant 0 : index
    %0 = vector.load %arg0[%c0, %c0_0] : memref<2x768xbf16, #tpu.memory_space<vmem>>, vector<2x768xbf16>
    %c0_1 = arith.constant 0 : index
    %c0_2 = arith.constant 0 : index
    %1 = vector.load %arg1[%c0_1, %c0_2] : memref<768x128xbf16, #tpu.memory_space<vmem>>, vector<768x128xbf16>
    %cst = arith.constant dense<0.000000e+00> : vector<2x128xf32>
    %2 = tpu.matmul %0, %1, %cst {dimension_numbers = #tpu.dot_dimension_numbers<[1], [0], [0], [1], [0, 0, 1, 1], [], []>} : vector<2x768xbf16>, vector<768x128xbf16>, vector<2x128xf32> -> vector<2x128xf32>
    %3 = arith.mulf %2, %2 : vector<2x128xf32>
    %cst_3 = arith.constant dense<0.000000e+00> : vector<2xf32>
    %4 = vector.multi_reduction <add>, %3, %cst_3 [1] : vector<2x128xf32> to vector<2xf32>
    %5 = vector.shape_cast %4 : vector<2xf32> to vector<2x1xf32>
    %cst_4 = arith.constant 9.99999996E-13 : f32
    %6 = vector.broadcast %cst_4 : f32 to vector<2x1xf32>
    %7 = arith.maximumf %5, %6 : vector<2x1xf32>
    %8 = math.rsqrt %7 : vector<2x1xf32>
    %9 = vector.broadcast %8 : vector<2x1xf32> to vector<2x128xf32>
    %10 = arith.mulf %2, %9 : vector<2x128xf32>
    %c0_5 = arith.constant 0 : index
    %c0_6 = arith.constant 0 : index
    %11 = vector.load %arg2[%c0_5, %c0_6] : memref<1x128xf32, #tpu.memory_space<vmem>>, vector<1x128xf32>
    %12 = vector.broadcast %11 : vector<1x128xf32> to vector<2x128xf32>
    %13 = arith.mulf %10, %12 : vector<2x128xf32>
    %cst_7 = arith.constant dense<0.000000e+00> : vector<2xf32>
    %14 = vector.multi_reduction <add>, %13, %cst_7 [1] : vector<2x128xf32> to vector<2xf32>
    %15 = vector.shape_cast %14 : vector<2xf32> to vector<2x1xf32>
    %cst_8 = arith.constant 1.000000e+00 : f32
    %16 = vector.broadcast %cst_8 : f32 to vector<2x1xf32>
    %17 = arith.subf %16, %15 : vector<2x1xf32>
    %18 = vector.shape_cast %17 : vector<2x1xf32> to vector<2x1xf32>
    %19 = vector.broadcast %18 : vector<2x1xf32> to vector<2x128xf32>
    %c0_9 = arith.constant 0 : index
    %c0_10 = arith.constant 0 : index
    %20 = vector.load %arg3[%c0_9, %c0_10] : memref<2x128xf32, #tpu.memory_space<vmem>>, vector<2x128xf32>
    tpu.vector_store %arg3[%c0_9, %c0_10], %19 {strides = array<i32>} : memref<2x128xf32, #tpu.memory_space<vmem>>, vector<2x128xf32>,
    return
  }
}

</mosaic_0001>

<llo_original>
// kernel: clip_energy_forward.1
$region0: #{clip_energy_forward.1}
  #allocation0 [shape = 'u32[]', space=smem, size = 0x4, offset = 0x4, fixed_abs, tag = 'smem constant byte address 0x4 - core index']
  #allocation1 [shape = 'u32[144,128]{1,0:T(1,128)}', space=vmem, size = 0x12000, scoped, tag = 'internal scratch']
  %s0 = inlined_call_operand.vmem [shape: bf16[2,768], index: 0, kind: input, shape index: {}]
  %s1 = inlined_call_operand.vmem [shape: bf16[768,128], index: 1, kind: input, shape index: {}]
  %s2 = inlined_call_operand.vmem [shape: f32[1,128], index: 2, kind: input, shape index: {}]
  %s3 = inlined_call_operand.vmem [shape: f32[2,128], index: 3, kind: output, shape index: {}]
  %s4 = sld [smem:[#allocation0]]
  $region22: #{clip_energy_forward.1} parent=0
    _
  %s6 = ssub.s32 1, %s4
  %s7 = scalar_select 0, %s6, %s4
  // Predicated region
  $region2: #{clip_energy_forward.1} parent=0 // pred_check
    _
  $region3: #{clip_energy_forward.1} parent=0 // pred_check_branch
    %9 = sbr.rel (0) target = $region5
  $region4: #{clip_energy_forward.1} parent=0 // pred_region
    _
  $region5: #{clip_energy_forward.1} parent=0 // pred_fallthru
    _
  // Predicated region
  $region6: #{clip_energy_forward.1} parent=0 // pred_check
    _
  $region7: #{clip_energy_forward.1} parent=0 // pred_check_branch
    %11 = sbr.rel (0) target = $region9
  $region8: #{clip_energy_forward.1} parent=0 // pred_region
    _
  $region9: #{clip_energy_forward.1} parent=0 // pred_fallthru
    _
  // Predicated region
  $region10: #{clip_energy_forward.1} parent=0 // pred_check
    _
  $region11: #{clip_energy_forward.1} parent=0 // pred_check_branch
    %13 = sbr.rel (0) target = $region13
  $region12: #{clip_energy_forward.1} parent=0 // pred_region
    _
  $region13: #{clip_energy_forward.1} parent=0 // pred_fallthru
    _
  %v15 = vld [vmem:[%s0] sm:$0x3f]
  %v16 = vld [vmem:[%s1] sm:$0xf]
  %v17 = vld [vmem:[%s1 + $0x4] sm:$0xf]
  %v18 = vld [vmem:[%s1 + $0x8] sm:$0xf]
  %v19 = vld [vmem:[%s1 + $0xc] sm:$0xf]
  %v20 = vld [vmem:[%s1 + $0x10] sm:$0xf]
  %v21 = vld [vmem:[%s1 + $0x14] sm:$0xf]
  %v22 = vld [vmem:[%s1 + $0x18] sm:$0xf]
  %v23 = vld [vmem:[%s1 + $0x1c] sm:$0xf]
  %v24 = vld [vmem:[%s1 + $0x20] sm:$0xf]
  %v25 = vld [vmem:[%s1 + $0x24] sm:$0xf]
  %v26 = vld [vmem:[%s1 + $0x28] sm:$0xf]
  %v27 = vld [vmem:[%s1 + $0x2c] sm:$0xf]
  %v28 = vld [vmem:[%s1 + $0x30] sm:$0xf]
  %v29 = vld [vmem:[%s1 + $0x34] sm:$0xf]
  %v30 = vld [vmem:[%s1 + $0x38] sm:$0xf]
  %v31 = vld [vmem:[%s1 + $0x3c] sm:$0xf]
  %v32 = vld [vmem:[%s1 + $0x40] sm:$0xf]
  %v33 = vld [vmem:[%s1 + $0x44] sm:$0xf]
  %v34 = vld [vmem:[%s1 + $0x48] sm:$0xf]
  %v35 = vld [vmem:[%s1 + $0x4c] sm:$0xf]
  %v36 = vld [vmem:[%s1 + $0x50] sm:$0xf]
  %v37 = vld [vmem:[%s1 + $0x54] sm:$0xf]
  %v38 = vld [vmem:[%s1 + $0x58] sm:$0xf]
  %v39 = vld [vmem:[%s1 + $0x5c] sm:$0xf]
  %v40 = vld [vmem:[%s1 + $0x60] sm:$0xf]
  %v41 = vld [vmem:[%s1 + $0x64] sm:$0xf]
  %v42 = vld [vmem:[%s1 + $0x68] sm:$0xf]
  %v43 = vld [vmem:[%s1 + $0x6c] sm:$0xf]
  %v44 = vld [vmem:[%s1 + $0x70] sm:$0xf]
  %v45 = vld [vmem:[%s1 + $0x74] sm:$0xf]
  %v46 = vld [vmem:[%s1 + $0x78] sm:$0xf]
  %v47 = vld [vmem:[%s1 + $0x7c] sm:$0xf]
  %v48 = vld [vmem:[%s1 + $0x80] sm:$0xf]
  %v49 = vld [vmem:[%s1 + $0x84] sm:$0xf]
  %v50 = vld [vmem:[%s1 + $0x88] sm:$0xf]
  %v51 = vld [vmem:[%s1 + $0x8c] sm:$0xf]
  %v52 = vld [vmem:[%s1 + $0x90] sm:$0xf]
  %v53 = vld [vmem:[%s1 + $0x94] sm:$0xf]
  %v54 = vld [vmem:[%s1 + $0x98] sm:$0xf]
  %v55 = vld [vmem:[%s1 + $0x9c] sm:$0xf]
  %v56 = vld [vmem:[%s1 + $0xa0] sm:$0xf]
  %v57 = vld [vmem:[%s1 + $0xa4] sm:$0xf]
  %v58 = vld [vmem:[%s1 + $0xa8] sm:$0xf]
  %v59 = vld [vmem:[%s1 + $0xac] sm:$0xf]
  %v60 = vld [vmem:[%s1 + $0xb0] sm:$0xf]
  %v61 = vld [vmem:[%s1 + $0xb4] sm:$0xf]
  %v62 = vld [vmem:[%s1 + $0xb8] sm:$0xf]
  %v63 = vld [vmem:[%s1 + $0xbc] sm:$0xf]
  %v64 = vld [vmem:[%s1 + $0xc0] sm:$0xf]
  %v65 = vld [vmem:[%s1 + $0xc4] sm:$0xf]
  %v66 = vld [vmem:[%s1 + $0xc8] sm:$0xf]
  %v67 = vld [vmem:[%s1 + $0xcc] sm:$0xf]
  %v68 = vld [vmem:[%s1 + $0xd0] sm:$0xf]
  %v69 = vld [vmem:[%s1 + $0xd4] sm:$0xf]
  %v70 = vld [vmem:[%s1 + $0xd8] sm:$0xf]
  %v71 = vld [vmem:[%s1 + $0xdc] sm:$0xf]
  %v72 = vld [vmem:[%s1 + $0xe0] sm:$0xf]
  %v73 = vld [vmem:[%s1 + $0xe4] sm:$0xf]
  %v74 = vld [vmem:[%s1 + $0xe8] sm:$0xf]
  %v75 = vld [vmem:[%s1 + $0xec] sm:$0xf]
  %v76 = vld [vmem:[%s1 + $0xf0] sm:$0xf]
  %v77 = vld [vmem:[%s1 + $0xf4] sm:$0xf]
  %v78 = vld [vmem:[%s1 + $0xf8] sm:$0xf]
  %v79 = vld [vmem:[%s1 + $0xfc] sm:$0xf]
  %v80 = vld [vmem:[%s1 + $0x100] sm:$0xf]
  %v81 = vld [vmem:[%s1 + $0x104] sm:$0xf]
  %v82 = vld [vmem:[%s1 + $0x108] sm:$0xf]
  %v83 = vld [vmem:[%s1 + $0x10c] sm:$0xf]
  %v84 = vld [vmem:[%s1 + $0x110] sm:$0xf]
  %v85 = vld [vmem:[%s1 + $0x114] sm:$0xf]
  %v86 = vld [vmem:[%s1 + $0x118] sm:$0xf]
  %v87 = vld [vmem:[%s1 + $0x11c] sm:$0xf]
  %v88 = vld [vmem:[%s1 + $0x120] sm:$0xf]
  %v89 = vld [vmem:[%s1 + $0x124] sm:$0xf]
  %v90 = vld [vmem:[%s1 + $0x128] sm:$0xf]
  %v91 = vld [vmem:[%s1 + $0x12c] sm:$0xf]
  %v92 = vld [vmem:[%s1 + $0x130] sm:$0xf]
  %v93 = vld [vmem:[%s1 + $0x134] sm:$0xf]
  %v94 = vld [vmem:[%s1 + $0x138] sm:$0xf]
  %v95 = vld [vmem:[%s1 + $0x13c] sm:$0xf]
  %v96 = vld [vmem:[%s1 + $0x140] sm:$0xf]
  %v97 = vld [vmem:[%s1 + $0x144] sm:$0xf]
  %v98 = vld [vmem:[%s1 + $0x148] sm:$0xf]
  %v99 = vld [vmem:[%s1 + $0x14c] sm:$0xf]
  %v100 = vld [vmem:[%s1 + $0x150] sm:$0xf]
  %v101 = vld [vmem:[%s1 + $0x154] sm:$0xf]
  %v102 = vld [vmem:[%s1 + $0x158] sm:$0xf]
  %v103 = vld [vmem:[%s1 + $0x15c] sm:$0xf]
  %v104 = vld [vmem:[%s1 + $0x160] sm:$0xf]
  %v105 = vld [vmem:[%s1 + $0x164] sm:$0xf]
  %v106 = vld [vmem:[%s1 + $0x168] sm:$0xf]
  %v107 = vld [vmem:[%s1 + $0x16c] sm:$0xf]
  %v108 = vld [vmem:[%s1 + $0x170] sm:$0xf]
  %v109 = vld [vmem:[%s1 + $0x174] sm:$0xf]
  %v110 = vld [vmem:[%s1 + $0x178] sm:$0xf]
  %v111 = vld [vmem:[%s1 + $0x17c] sm:$0xf]
  %v113 = vcombine.high %v15, %v15
  %v115 = vunpack.c.l.s4 1966171168
  %v116 = vunpack.c.0.s8 %v115
  %v117 = vlaneseq
  %v118 = vshrl.u32 %v117, 7
  %v119 = vsub.s32 %v116, %v118
  %v120 = vrot.slane %v15, %v119
  %v122 = vunpack.c.l.s4 1966171168
  %v123 = vunpack.c.0.s8 %v122
  %v124 = vlaneseq
  %v125 = vshrl.u32 %v124, 7
  %v126 = vsub.s32 %v123, %v125
  %v127 = vrot.slane %v113, %v126
  %v128 = vcombine.high %v120, %v120
  %v129 = vcombine.high %v127, %v127
  %v131 = vunpack.c.l.s4 1966171168
  %v132 = vunpack.c.0.s8 %v131
  %v133 = vlaneseq
  %v134 = vshrl.u32 %v133, 7
  %v135 = vsub.s32 %v132, %v134
  %v136 = vrot.slane %v120, %v135
  %v138 = vunpack.c.l.s4 1966171168
  %v139 = vunpack.c.0.s8 %v138
  %v140 = vlaneseq
  %v141 = vshrl.u32 %v140, 7
  %v142 = vsub.s32 %v139, %v141
  %v143 = vrot.slane %v127, %v142
  %v145 = vunpack.c.l.s4 1966171168
  %v146 = vunpack.c.0.s8 %v145
  %v147 = vlaneseq
  %v148 = vshrl.u32 %v147, 7
  %v149 = vsub.s32 %v146, %v148
  %v150 = vrot.slane %v128, %v149
  %v152 = vunpack.c.l.s4 1966171168
  %v153 = vunpack.c.0.s8 %v152
  %v154 = vlaneseq
  %v155 = vshrl.u32 %v154, 7
  %v156 = vsub.s32 %v153, %v155
  %v157 = vrot.slane %v129, %v156
  %v158 = vcombine.high %v136, %v136
  %v159 = vcombine.high %v150, %v150
  %v262 = vunpack.c.l.b16 %v16
  %v263 = vunpack.c.l.b16 %v17
  %v264 = vunpack.c.l.b16 %v18
  %v265 = vunpack.c.l.b16 %v19
  %v266 = vunpack.c.l.b16 %v20
  %v267 = vunpack.c.l.b16 %v21
  %v268 = vunpack.c.l.b16 %v22
  %v269 = vunpack.c.l.b16 %v23
  %v270 = vunpack.c.l.b16 %v24
  %v271 = vunpack.c.l.b16 %v25
  %v272 = vunpack.c.l.b16 %v26
  %v273 = vunpack.c.l.b16 %v27
  %v274 = vunpack.c.l.b16 %v28
  %v275 = vunpack.c.l.b16 %v29
  %v276 = vunpack.c.l.b16 %v30
  %v277 = vunpack.c.l.b16 %v31
  %v278 = vunpack.c.l.b16 %v32
  %v279 = vunpack.c.l.b16 %v33
  %v280 = vunpack.c.l.b16 %v34
  %v281 = vunpack.c.l.b16 %v35
  %v282 = vunpack.c.l.b16 %v36
  %v283 = vunpack.c.l.b16 %v37
  %v284 = vunpack.c.l.b16 %v38
  %v285 = vunpack.c.l.b16 %v39
  %v286 = vunpack.c.l.b16 %v40
  %v287 = vunpack.c.l.b16 %v41
  %v288 = vunpack.c.l.b16 %v42
  %v289 = vunpack.c.l.b16 %v43
  %v290 = vunpack.c.l.b16 %v44
  %v291 = vunpack.c.l.b16 %v45
  %v292 = vunpack.c.l.b16 %v46
  %v293 = vunpack.c.l.b16 %v47
  %v294 = vunpack.c.l.b16 %v48
  %v295 = vunpack.c.l.b16 %v49
  %v296 = vunpack.c.l.b16 %v50
  %v297 = vunpack.c.l.b16 %v51
  %v298 = vunpack.c.l.b16 %v52
  %v299 = vunpack.c.l.b16 %v53
  %v300 = vunpack.c.l.b16 %v54
  %v301 = vunpack.c.l.b16 %v55
  %v302 = vunpack.c.l.b16 %v56
  %v303 = vunpack.c.l.b16 %v57
  %v304 = vunpack.c.l.b16 %v58
  %v305 = vunpack.c.l.b16 %v59
  %v306 = vunpack.c.l.b16 %v60
  %v307 = vunpack.c.l.b16 %v61
  %v308 = vunpack.c.l.b16 %v62
  %v309 = vunpack.c.l.b16 %v63
  %v310 = vunpack.c.l.b16 %v64
  %v311 = vunpack.c.l.b16 %v65
  %v312 = vunpack.c.l.b16 %v66
  %v313 = vunpack.c.l.b16 %v67
  %v314 = vunpack.c.l.b16 %v68
  %v315 = vunpack.c.l.b16 %v69
  %v316 = vunpack.c.l.b16 %v70
  %v317 = vunpack.c.l.b16 %v71
  %v318 = vunpack.c.l.b16 %v72
  %v319 = vunpack.c.l.b16 %v73
  %v320 = vunpack.c.l.b16 %v74
  %v321 = vunpack.c.l.b16 %v75
  %v322 = vunpack.c.l.b16 %v76
  %v323 = vunpack.c.l.b16 %v77
  %v324 = vunpack.c.l.b16 %v78
  %v325 = vunpack.c.l.b16 %v79
  %v326 = vunpack.c.l.b16 %v80
  %v327 = vunpack.c.l.b16 %v81
  %v328 = vunpack.c.l.b16 %v82
  %v329 = vunpack.c.l.b16 %v83
  %v330 = vunpack.c.l.b16 %v84
  %v331 = vunpack.c.l.b16 %v85
  %v332 = vunpack.c.l.b16 %v86
  %v333 = vunpack.c.l.b16 %v87
  %v334 = vunpack.c.l.b16 %v88
  %v335 = vunpack.c.l.b16 %v89
  %v336 = vunpack.c.l.b16 %v90
  %v337 = vunpack.c.l.b16 %v91
  %v338 = vunpack.c.l.b16 %v92
  %v339 = vunpack.c.l.b16 %v93
  %v340 = vunpack.c.l.b16 %v94
  %v341 = vunpack.c.l.b16 %v95
  %v342 = vunpack.c.l.b16 %v96
  %v343 = vunpack.c.l.b16 %v97
  %v344 = vunpack.c.l.b16 %v98
  %v345 = vunpack.c.l.b16 %v99
  %v346 = vunpack.c.l.b16 %v100
  %v347 = vunpack.c.l.b16 %v101
  %v348 = vunpack.c.l.b16 %v102
  %v349 = vunpack.c.l.b16 %v103
  %v350 = vunpack.c.l.b16 %v104
  %v351 = vunpack.c.l.b16 %v105
  %v352 = vunpack.c.l.b16 %v106
  %v353 = vunpack.c.l.b16 %v107
  %v354 = vunpack.c.l.b16 %v108
  %v355 = vunpack.c.l.b16 %v109
  %v356 = vunpack.c.l.b16 %v110
  %v357 = vunpack.c.l.b16 %v111
  %v358 = vpack.c.b16 %v263, %v262
  %v359 = vpack.c.b16 %v265, %v264
  %v360 = vpack.c.b16 %v267, %v266
  %v361 = vpack.c.b16 %v269, %v268
  %v362 = vpack.c.b16 %v271, %v270
  %v363 = vpack.c.b16 %v273, %v272
  %v364 = vpack.c.b16 %v275, %v274
  %v365 = vpack.c.b16 %v277, %v276
  %v366 = vpack.c.b16 %v279, %v278
  %v367 = vpack.c.b16 %v281, %v280
  %v368 = vpack.c.b16 %v283, %v282
  %v369 = vpack.c.b16 %v285, %v284
  %v370 = vpack.c.b16 %v287, %v286
  %v371 = vpack.c.b16 %v289, %v288
  %v372 = vpack.c.b16 %v291, %v290
  %v373 = vpack.c.b16 %v293, %v292
  %v374 = vpack.c.b16 %v295, %v294
  %v375 = vpack.c.b16 %v297, %v296
  %v376 = vpack.c.b16 %v299, %v298
  %v377 = vpack.c.b16 %v301, %v300
  %v378 = vpack.c.b16 %v303, %v302
  %v379 = vpack.c.b16 %v305, %v304
  %v380 = vpack.c.b16 %v307, %v306
  %v381 = vpack.c.b16 %v309, %v308
  %v382 = vpack.c.b16 %v311, %v310
  %v383 = vpack.c.b16 %v313, %v312
  %v384 = vpack.c.b16 %v315, %v314
  %v385 = vpack.c.b16 %v317, %v316
  %v386 = vpack.c.b16 %v319, %v318
  %v387 = vpack.c.b16 %v321, %v320
  %v388 = vpack.c.b16 %v323, %v322
  %v389 = vpack.c.b16 %v325, %v324
  %v390 = vpack.c.b16 %v327, %v326
  %v391 = vpack.c.b16 %v329, %v328
  %v392 = vpack.c.b16 %v331, %v330
  %v393 = vpack.c.b16 %v333, %v332
  %v394 = vpack.c.b16 %v335, %v334
  %v395 = vpack.c.b16 %v337, %v336
  %v396 = vpack.c.b16 %v339, %v338
  %v397 = vpack.c.b16 %v341, %v340
  %v398 = vpack.c.b16 %v343, %v342
  %v399 = vpack.c.b16 %v345, %v344
  %v400 = vpack.c.b16 %v347, %v346
  %v401 = vpack.c.b16 %v349, %v348
  %v402 = vpack.c.b16 %v351, %v350
  %v403 = vpack.c.b16 %v353, %v352
  %v404 = vpack.c.b16 %v355, %v354
  %v405 = vpack.c.b16 %v357, %v356
  %454 = vmatprep.subr.bf16.mxu0 0
  %455 = vmatpush1.bf16.msra.mxu0 %v358
  %456 = vmatprep.subr.bf16.mxu0 0
  %457 = vmatpush1.bf16.msra.mxu0 %v359
  %458 = vmatprep.subr.bf16.mxu0 0
  %459 = vmatpush1.bf16.msra.mxu0 %v360
  %460 = vmatprep.subr.bf16.mxu0 0
  %461 = vmatpush1.bf16.msra.mxu0 %v361
  %462 = vmatprep.subr.bf16.mxu0 0
  %463 = vmatpush1.bf16.msra.mxu0 %v362
  %464 = vmatprep.subr.bf16.mxu0 0
  %465 = vmatpush1.bf16.msra.mxu0 %v363
  %466 = vmatprep.subr.bf16.mxu0 0
  %467 = vmatpush1.bf16.msra.mxu0 %v364
  %468 = vmatprep.subr.bf16.mxu0 0
  %469 = vmatpush1.bf16.msra.mxu0 %v365
  %470 = vmatprep.subr.bf16.mxu0 0
  %471 = vmatpush1.bf16.msra.mxu0 %v366
  %472 = vmatprep.subr.bf16.mxu0 0
  %473 = vmatpush1.bf16.msra.mxu0 %v367
  %474 = vmatprep.subr.bf16.mxu0 0
  %475 = vmatpush1.bf16.msra.mxu0 %v368
  %476 = vmatprep.subr.bf16.mxu0 0
  %477 = vmatpush1.bf16.msra.mxu0 %v369
  %478 = vmatprep.subr.bf16.mxu0 0
  %479 = vmatpush1.bf16.msra.mxu0 %v370
  %480 = vmatprep.subr.bf16.mxu0 0
  %481 = vmatpush1.bf16.msra.mxu0 %v371
  %482 = vmatprep.subr.bf16.mxu0 0
  %483 = vmatpush1.bf16.msra.mxu0 %v372
  %484 = vmatprep.subr.bf16.mxu0 0
  %485 = vmatpush1.bf16.msra.mxu0 %v373
  %486 = vmatprep.mubr.bf16.mxu0 %v150
  %487 = vmatmul.mubr.bf16.gmra.mrb[0].mxu0 %v136
  %v488 = vpop.f32.mrb[0].mxu0
  %v489 = vadd.f32 0.0, %v488
  %v490 = vpop.f32.mrb[0].mxu0
  %v491 = vpop.f32.mrb[0].mxu0
  %v492 = vpop.f32.mrb[0].mxu0
  %493 = vdwg.mxu0
  %494 = vmatprep.subr.bf16.mxu0 0
  %495 = vmatpush1.bf16.msra.mxu0 %v374
  %496 = vmatprep.subr.bf16.mxu0 0
  %497 = vmatpush1.bf16.msra.mxu0 %v375
  %498 = vmatprep.subr.bf16.mxu0 0
  %499 = vmatpush1.bf16.msra.mxu0 %v376
  %500 = vmatprep.subr.bf16.mxu0 0
  %501 = vmatpush1.bf16.msra.mxu0 %v377
  %502 = vmatprep.subr.bf16.mxu0 0
  %503 = vmatpush1.bf16.msra.mxu0 %v378
  %504 = vmatprep.subr.bf16.mxu0 0
  %505 = vmatpush1.bf16.msra.mxu0 %v379
  %506 = vmatprep.subr.bf16.mxu0 0
  %507 = vmatpush1.bf16.msra.mxu0 %v380
  %508 = vmatprep.subr.bf16.mxu0 0
  %509 = vmatpush1.bf16.msra.mxu0 %v381
  %510 = vmatprep.subr.bf16.mxu0 0
  %511 = vmatpush1.bf16.msra.mxu0 %v382
  %512 = vmatprep.subr.bf16.mxu0 0
  %513 = vmatpush1.bf16.msra.mxu0 %v383
  %514 = vmatprep.subr.bf16.mxu0 0
  %515 = vmatpush1.bf16.msra.mxu0 %v384
  %516 = vmatprep.subr.bf16.mxu0 0
  %517 = vmatpush1.bf16.msra.mxu0 %v385
  %518 = vmatprep.subr.bf16.mxu0 0
  %519 = vmatpush1.bf16.msra.mxu0 %v386
  %520 = vmatprep.subr.bf16.mxu0 0
  %521 = vmatpush1.bf16.msra.mxu0 %v387
  %522 = vmatprep.subr.bf16.mxu0 0
  %523 = vmatpush1.bf16.msra.mxu0 %v388
  %524 = vmatprep.subr.bf16.mxu0 0
  %525 = vmatpush1.bf16.msra.mxu0 %v389
  %526 = vmatprep.mubr.bf16.mxu0 %v159
  %527 = vmatmul.mubr.bf16.gmra.mrb[0].mxu0 %v158
  %v528 = vpop.f32.mrb[0].mxu0
  %v529 = vadd.f32 %v489, %v528
  %v530 = vpop.f32.mrb[0].mxu0
  %v531 = vpop.f32.mrb[0].mxu0
  %v532 = vpop.f32.mrb[0].mxu0
  %533 = vdwg.mxu0
  %534 = vmatprep.subr.bf16.mxu0 0
  %535 = vmatpush1.bf16.msra.mxu0 %v390
  %536 = vmatprep.subr.bf16.mxu0 0
  %537 = vmatpush1.bf16.msra.mxu0 %v391
  %538 = vmatprep.subr.bf16.mxu0 0
  %539 = vmatpush1.bf16.msra.mxu0 %v392
  %540 = vmatprep.subr.bf16.mxu0 0
  %541 = vmatpush1.bf16.msra.mxu0 %v393
  %542 = vmatprep.subr.bf16.mxu0 0
  %543 = vmatpush1.bf16.msra.mxu0 %v394
  %544 = vmatprep.subr.bf16.mxu0 0
  %545 = vmatpush1.bf16.msra.mxu0 %v395
  %546 = vmatprep.subr.bf16.mxu0 0
  %547 = vmatpush1.bf16.msra.mxu0 %v396
  %548 = vmatprep.subr.bf16.mxu0 0
  %549 = vmatpush1.bf16.msra.mxu0 %v397
  %550 = vmatprep.subr.bf16.mxu0 0
  %551 = vmatpush1.bf16.msra.mxu0 %v398
  %552 = vmatprep.subr.bf16.mxu0 0
  %553 = vmatpush1.bf16.msra.mxu0 %v399
  %554 = vmatprep.subr.bf16.mxu0 0
  %555 = vmatpush1.bf16.msra.mxu0 %v400
  %556 = vmatprep.subr.bf16.mxu0 0
  %557 = vmatpush1.bf16.msra.mxu0 %v401
  %558 = vmatprep.subr.bf16.mxu0 0
  %559 = vmatpush1.bf16.msra.mxu0 %v402
  %560 = vmatprep.subr.bf16.mxu0 0
  %561 = vmatpush1.bf16.msra.mxu0 %v403
  %562 = vmatprep.subr.bf16.mxu0 0
  %563 = vmatpush1.bf16.msra.mxu0 %v404
  %564 = vmatprep.subr.bf16.mxu0 0
  %565 = vmatpush1.bf16.msra.mxu0 %v405
  %566 = vmatprep.mubr.bf16.mxu0 %v157
  %567 = vmatmul.mubr.bf16.gmra.mrb[0].mxu0 %v143
  %v568 = vpop.f32.mrb[0].mxu0
  %v569 = vadd.f32 %v529, %v568
  %v570 = vpop.f32.mrb[0].mxu0
  %v571 = vpop.f32.mrb[0].mxu0
  %v572 = vpop.f32.mrb[0].mxu0
  %573 = vdwg.mxu0
  %v574 = vmul.f32 %v569, %v569
  %vm575 = vcmask 1041408
  %v576 = vsel %vm575, %v574, 0.0
  %577 = vadd.xlane.f32.xlu0 %v576
  %v578 = vpop.xlane.xlu0 %577
  %v579 = vmax.f32 %v578, 1e-12
  %v580 = vrsqrt.pop %v579
  %v581 = vmul.f32 %v569, %v580
  %v582 = vld [vmem:[%s2] sm:$0x1]
  %v584 = vlaneseq
  %v585 = vshrl.u32 %v584, 7
  %v586 = vsub.s32 0, %v585
  %v587 = vrot.slane %v582, %v586
  %v589 = vmul.f32 %v581, %v587
  %v590 = vsel %vm575, %v589, 0.0
  %591 = vadd.xlane.f32.xlu0 %v590
  %v592 = vpop.xlane.xlu0 %591
  %v593 = vsub.f32 1.0, %v592
  %594 = vst [vmem:[%s3] sm:$0x3] %v593
  // Predicated region
  $region14: #{clip_energy_forward.1} parent=0 // pred_check
    _
  $region15: #{clip_energy_forward.1} parent=0 // pred_check_branch
    %596 = sbr.rel (0) target = $region17
  $region16: #{clip_energy_forward.1} parent=0 // pred_region
    _
  $region17: #{clip_energy_forward.1} parent=0 // pred_fallthru
    _
  // Predicated region
  $region18: #{clip_energy_forward.1} parent=0 // pred_check
    _
  $region19: #{clip_energy_forward.1} parent=0 // pred_check_branch
    %598 = sbr.rel (0) target = $region21
  $region20: #{clip_energy_forward.1} parent=0 // pred_region
    _
  $region21: #{clip_energy_forward.1} parent=0 // pred_fallthru
    _

</llo_original>
